<compile_context>
chip_gen: v7x
topology: tpu7x:2x2x1
jax: 0.10.0
libtpu: 0.0.40
codegen_flags: <defaults>
</compile_context>

<pallas_src>
import jax
import jax.numpy as jnp
from jax.experimental import pallas as pl
from jax.experimental.pallas import tpu as pltpu

EPS = 1e-8


def _round_up(x: int, m: int) -> int:
    return ((x + m - 1) // m) * m


def _cosine_kernel_single(x1_ref, x2_ref, inv1_ref, inv2h_ref, o_ref):
    # sim[i, j] = sum_d x1[i, d] * x2[j, d]   (q·kᵀ MXU pattern, f32 accumulate)
    sim = jax.lax.dot_general(
        x1_ref[...], x2_ref[...],
        dimension_numbers=(((1,), (1,)), ((), ())),
        preferred_element_type=jnp.float32)                       # (TM, TN)
    # (sim * inv1 * inv2 + 1) / 2 with 0.5 pre-folded into inv2h.
    o_ref[...] = ((sim * inv1_ref[...]) * inv2h_ref[...] + 0.5).astype(o_ref.dtype)


def _cosine_kernel_ksplit(x1_ref, x2_ref, inv1_ref, inv2h_ref, o_ref, acc_ref):
    k = pl.program_id(2)

    @pl.when(k == 0)
    def _():
        acc_ref[...] = jnp.zeros_like(acc_ref)

    acc_ref[...] += jax.lax.dot_general(
        x1_ref[...], x2_ref[...],
        dimension_numbers=(((1,), (1,)), ((), ())),
        preferred_element_type=jnp.float32)

    @pl.when(k == pl.num_programs(2) - 1)
    def _():
        o_ref[...] = ((acc_ref[...] * inv1_ref[...]) * inv2h_ref[...]
                      + 0.5).astype(o_ref.dtype)


def cosine_similarity_matrix(x1, x2, *, tm: int = 512, tn: int = 256,
                             max_tk: int = 2048, out_dtype=jnp.float32):
    """x1: (N1, D), x2: (N2, D)  ->  (N1, N2) `out_dtype` (default float32)."""
    n1, d = x1.shape
    n2, d2 = x2.shape
    assert d == d2, "feature dims must match"
    itemsize = jnp.dtype(x1.dtype).itemsize
    out_itemsize = jnp.dtype(out_dtype).itemsize

    # ---- Hoisted norms: f32, from the ORIGINAL (un-padded, un-narrowed) inputs.
    x1f = x1.astype(jnp.float32)
    x2f = x2.astype(jnp.float32)
    inv1 = (1.0 / jnp.maximum(jnp.sqrt(jnp.sum(x1f * x1f, axis=1)), EPS))[:, None]   # (N1,1)
    inv2h = (0.5 / jnp.maximum(jnp.sqrt(jnp.sum(x2f * x2f, axis=1)), EPS))[None, :]  # (1,N2)

    # ---- Tile sizes: sublane-aligned TM, lane-dense TN, K-split only for big D.
    tm_eff = min(tm, _round_up(n1, 8))
    tn_eff = min(tn, _round_up(n2, 128))
    if d <= max_tk:
        tk_eff, dp = d, d
    else:
        tk_eff = max(128, (max_tk // 128) * 128)
        dp = _round_up(d, tk_eff)
    n1p = _round_up(n1, tm_eff)
    n2p = _round_up(n2, tn_eff)

    # ---- Zero-pad (padding rows/dims contribute 0 to dots; filler entries are 0.5).
    x1p = x1 if (n1p == n1 and dp == d) else jnp.pad(x1, ((0, n1p - n1), (0, dp - d)))
    x2p = x2 if (n2p == n2 and dp == d) else jnp.pad(x2, ((0, n2p - n2), (0, dp - d)))
    inv1p = inv1 if n1p == n1 else jnp.pad(inv1, ((0, n1p - n1), (0, 0)))
    inv2hp = inv2h if n2p == n2 else jnp.pad(inv2h, ((0, 0), (0, n2p - n2)))

    gi, gj, gk = n1p // tm_eff, n2p // tn_eff, dp // tk_eff

    # ---- Orientation: keep resident the operand that minimizes total HBM traffic.
    traffic_x1_res = n1p * dp * (1 if gk == 1 else gj) + gi * n2p * dp
    traffic_x2_res = n2p * dp * (1 if gk == 1 else gi) + gj * n1p * dp
    resident_x1 = traffic_x1_res <= traffic_x2_res

    if gk == 1:
        kernel = _cosine_kernel_single
        scratch = []
        semantics = ("parallel", "parallel")
        if resident_x1:
            grid = (gi, gj)
            x1_map = lambda i, j: (i, 0)
            x2_map = lambda i, j: (j, 0)
            inv1_map = lambda i, j: (i, 0)
            inv2_map = lambda i, j: (0, j)
            o_map = lambda i, j: (i, j)
        else:
            grid = (gj, gi)
            x1_map = lambda j, i: (i, 0)
            x2_map = lambda j, i: (j, 0)
            inv1_map = lambda j, i: (i, 0)
            inv2_map = lambda j, i: (0, j)
            o_map = lambda j, i: (i, j)
    else:
        kernel = _cosine_kernel_ksplit
        scratch = [pltpu.VMEM((tm_eff, tn_eff), jnp.float32)]
        semantics = ("parallel", "parallel", "arbitrary")
        if resident_x1:
            grid = (gi, gj, gk)
            x1_map = lambda i, j, k: (i, k)
            x2_map = lambda i, j, k: (j, k)
            inv1_map = lambda i, j, k: (i, 0)
            inv2_map = lambda i, j, k: (0, j)
            o_map = lambda i, j, k: (i, j)
        else:
            grid = (gj, gi, gk)
            x1_map = lambda j, i, k: (i, k)
            x2_map = lambda j, i, k: (j, k)
            inv1_map = lambda j, i, k: (i, 0)
            inv2_map = lambda j, i, k: (0, j)
            o_map = lambda j, i, k: (i, j)

    # ---- VMEM budget: actual tile footprint + headroom, v7x-safe cap (<=48 MiB).
    footprint = (2 * (tm_eff + tn_eff) * tk_eff * itemsize      # double-buffered input tiles
                 + 2 * (tm_eff + tn_eff) * 4                    # inv-norm vectors
                 + 2 * tm_eff * tn_eff * out_itemsize           # double-buffered output tile
                 + (tm_eff * tn_eff * 4 if gk > 1 else 0))      # f32 accumulator scratch
    vmem_limit = min(max(32 * 1024 * 1024, int(footprint * 1.5)), 48 * 1024 * 1024)

    cost = pl.CostEstimate(
        flops=2 * n1p * n2p * dp,
        bytes_accessed=(itemsize * min(traffic_x1_res, traffic_x2_res)
                        + 4 * (n1p + n2p) + out_itemsize * n1p * n2p),
        transcendentals=0,
    )

    out = pl.pallas_call(
        kernel,
        out_shape=jax.ShapeDtypeStruct((n1p, n2p), out_dtype),
        grid_spec=pltpu.PrefetchScalarGridSpec(
            num_scalar_prefetch=0,
            grid=grid,
            in_specs=[
                pl.BlockSpec((tm_eff, tk_eff), x1_map),
                pl.BlockSpec((tn_eff, tk_eff), x2_map),
                pl.BlockSpec((tm_eff, 1), inv1_map),
                pl.BlockSpec((1, tn_eff), inv2_map),
            ],
            out_specs=pl.BlockSpec((tm_eff, tn_eff), o_map),
            scratch_shapes=scratch,
        ),
        compiler_params=pltpu.CompilerParams(
            dimension_semantics=semantics,
            vmem_limit_bytes=vmem_limit,
        ),
        cost_estimate=cost,
    )(x1p, x2p, inv1p, inv2hp)

    # Slice only if padding was actually added (slices are copies, not views).
    if n1p != n1 or n2p != n2:
        out = out[:n1, :n2]
    return out


def _reference(x1, x2, eps=EPS):
    # Pure-JAX reference mirroring the PyTorch code path.
    xn1 = jnp.linalg.norm(x1, axis=1)
    xn2 = jnp.linalg.norm(x2, axis=1)
    x1n = x1 / jnp.maximum(xn1, eps)[:, None]
    x2n = x2 / jnp.maximum(xn2, eps)[:, None]
    sim = x1n @ x2n.T
    return (sim + 1.0) / 2.0


if __name__ == "__main__":
    key = jax.random.PRNGKey(0)
    k1, k2, k3, k4, k5, k6 = jax.random.split(key, 6)

    # Case 1: small shapes matching the module's forward (dim=1 features).
    N1, N2, D = 8, 8, 32
    x1 = jax.random.normal(k1, (N1, D), dtype=jnp.float32)
    x2 = jax.random.normal(k2, (N2, D), dtype=jnp.float32)
    out = jax.block_until_ready(cosine_similarity_matrix(x1, x2))
    ref = _reference(x1, x2)
    assert out.shape == (N1, N2)
    assert jnp.allclose(out, ref, atol=1e-5, rtol=1e-5), "mismatch vs reference (small)"

    # Case 2: ragged sizes exercising the padding path.
    M1, M2, D2 = 300, 200, 96
    y1 = jax.random.normal(k3, (M1, D2), dtype=jnp.float32)
    y2 = jax.random.normal(k4, (M2, D2), dtype=jnp.float32)
    out2 = jax.block_until_ready(cosine_similarity_matrix(y1, y2))
    ref2 = _reference(y1, y2)
    assert out2.shape == (M1, M2)
    assert jnp.allclose(out2, ref2, atol=1e-5, rtol=1e-5), "mismatch vs reference (ragged)"

    # Case 3: force the K-split accumulator path + multi-tile grid.
    P1, P2, D3 = 136, 384, 384
    z1 = jax.random.normal(k5, (P1, D3), dtype=jnp.float32)
    z2 = jax.random.normal(k6, (P2, D3), dtype=jnp.float32)
    out3 = jax.block_until_ready(
        cosine_similarity_matrix(z1, z2, tm=128, tn=128, max_tk=128))
    ref3 = _reference(z1, z2)
    assert out3.shape == (P1, P2)
    assert jnp.allclose(out3, ref3, atol=1e-5, rtol=1e-5), "mismatch vs reference (ksplit)"

    print("KERNEL_OK")
</pallas_src>

<mosaic_0001>
module attributes {stable_mosaic.version = 11 : i64} {
  func.func @_cosine_kernel_single(%arg0: i32, %arg1: i32, %arg2: memref<8x32xf32, #tpu.memory_space<vmem>>, %arg3: memref<128x32xf32, #tpu.memory_space<vmem>>, %arg4: memref<8x1xf32, #tpu.memory_space<vmem>>, %arg5: memref<1x128xf32, #tpu.memory_space<vmem>>, %arg6: memref<8x128xf32, #tpu.memory_space<vmem>>) attributes {dimension_semantics = [#tpu.dimension_semantics<parallel>, #tpu.dimension_semantics<parallel>], iteration_bounds = array<i64: 1, 1>, scalar_prefetch = 0 : i64, scratch_operands = 0 : i64, tpu.core_type = #tpu.core_type<tc>, window_params = [{transform_indices = @transform_0, window_bounds = array<i64: 8, 32>}, {transform_indices = @transform_1, window_bounds = array<i64: 128, 32>}, {transform_indices = @transform_2, window_bounds = array<i64: 8, 1>}, {transform_indices = @transform_3, window_bounds = array<i64: 1, 128>}, {transform_indices = @transform_4, window_bounds = array<i64: 8, 128>}]} {
    %c0 = arith.constant 0 : index
    %c0_0 = arith.constant 0 : index
    %0 = vector.load %arg2[%c0, %c0_0] : memref<8x32xf32, #tpu.memory_space<vmem>>, vector<8x32xf32>
    %c0_1 = arith.constant 0 : index
    %c0_2 = arith.constant 0 : index
    %1 = vector.load %arg3[%c0_1, %c0_2] : memref<128x32xf32, #tpu.memory_space<vmem>>, vector<128x32xf32>
    %cst = arith.constant dense<0.000000e+00> : vector<8x128xf32>
    %2 = tpu.matmul %0, %1, %cst {dimension_numbers = #tpu.dot_dimension_numbers<[1], [1], [0], [0], [0, 0, 1, 0], [], []>} : vector<8x32xf32>, vector<128x32xf32>, vector<8x128xf32> -> vector<8x128xf32>
    %c0_3 = arith.constant 0 : index
    %c0_4 = arith.constant 0 : index
    %3 = vector.load %arg4[%c0_3, %c0_4] : memref<8x1xf32, #tpu.memory_space<vmem>>, vector<8x1xf32>
    %4 = vector.broadcast %3 : vector<8x1xf32> to vector<8x128xf32>
    %5 = arith.mulf %2, %4 : vector<8x128xf32>
    %c0_5 = arith.constant 0 : index
    %c0_6 = arith.constant 0 : index
    %6 = vector.load %arg5[%c0_5, %c0_6] : memref<1x128xf32, #tpu.memory_space<vmem>>, vector<1x128xf32>
    %7 = vector.broadcast %6 : vector<1x128xf32> to vector<8x128xf32>
    %8 = arith.mulf %5, %7 : vector<8x128xf32>
    %cst_7 = arith.constant 5.000000e-01 : f32
    %9 = vector.broadcast %cst_7 : f32 to vector<8x128xf32>
    %10 = arith.addf %8, %9 : vector<8x128xf32>
    %c0_8 = arith.constant 0 : index
    %c0_9 = arith.constant 0 : index
    %11 = vector.load %arg6[%c0_8, %c0_9] : memref<8x128xf32, #tpu.memory_space<vmem>>, vector<8x128xf32>
    tpu.vector_store %arg6[%c0_8, %c0_9], %10 {strides = array<i32>} : memref<8x128xf32, #tpu.memory_space<vmem>>, vector<8x128xf32>,
    return
  }
  func.func @transform_0(%arg0: i32, %arg1: i32) -> (i32, i32) {
    %c0_i32 = arith.constant 0 : i32
    %c0_i32_0 = arith.constant 0 : i32
    return %arg0, %c0_i32 : i32, i32
  }
  func.func @transform_1(%arg0: i32, %arg1: i32) -> (i32, i32) {
    %c0_i32 = arith.constant 0 : i32
    %c0_i32_0 = arith.constant 0 : i32
    return %arg1, %c0_i32 : i32, i32
  }
  func.func @transform_2(%arg0: i32, %arg1: i32) -> (i32, i32) {
    %c0_i32 = arith.constant 0 : i32
    %c0_i32_0 = arith.constant 0 : i32
    return %arg0, %c0_i32 : i32, i32
  }
  func.func @transform_3(%arg0: i32, %arg1: i32) -> (i32, i32) {
    %c0_i32 = arith.constant 0 : i32
    %c0_i32_0 = arith.constant 0 : i32
    return %c0_i32, %arg1 : i32, i32
  }
  func.func @transform_4(%arg0: i32, %arg1: i32) -> (i32, i32) {
    %c0_i32 = arith.constant 0 : i32
    return %arg0, %arg1 : i32, i32
  }
}

</mosaic_0001>

<llo_original>
// kernel: tpu_custom_call.1
$region0: #{tpu_custom_call.1}
  #allocation0 [shape = 'u32[]', space=smem, size = 0x4, offset = 0x4, fixed_abs, tag = 'smem constant byte address 0x4 - core index']
  #allocation1 [shape = 'u32[144,128]{1,0:T(1,128)}', space=vmem, size = 0x12000, scoped, tag = 'internal scratch']
  %s0 = inlined_call_operand.vmem [shape: f32[8,32], index: 0, kind: input, shape index: {}]
  %s1 = inlined_call_operand.vmem [shape: f32[128,32], index: 1, kind: input, shape index: {}]
  %s2 = inlined_call_operand.vmem [shape: f32[8,1], index: 2, kind: input, shape index: {}]
  %s3 = inlined_call_operand.vmem [shape: f32[1,128], index: 3, kind: input, shape index: {}]
  %s4 = inlined_call_operand.hbm [shape: f32[8,128], index: 4, kind: output, shape index: {}]
  %s5 = sld [smem:[#allocation0]]
  $region26: #{tpu_custom_call.1} parent=0
    _
  %s7 = ssub.s32 1, %s5
  %s8 = scalar_select 0, %s7, %s5
  $region1: #{tpu_custom_call.1} parent=0
    #allocation2 [shape = 'u8[4096]{0}', space=vmem, size = 0x1000, scoped, tag = 'output window, operand 0, single buffered']
    #allocation3 [shape = 's32[1]{0}', space=sflag, size = 0x4, scoped, tag = 'scoped memory for tpu_custom_call.1']
    %9 = vsyncpa [#allocation3], 0
    // Predicated region
    $region2: #{tpu_custom_call.1} parent=1 // pred_check
      _
    $region3: #{tpu_custom_call.1} parent=1 // pred_check_branch
      %11 = sbr.rel (0) target = $region5
    $region4: #{tpu_custom_call.1} parent=1 // pred_region
      _
    $region5: #{tpu_custom_call.1} parent=1 // pred_fallthru
      _
    // Predicated region
    $region6: #{tpu_custom_call.1} parent=1 // pred_check
      _
    $region7: #{tpu_custom_call.1} parent=1 // pred_check_branch
      %13 = sbr.rel (0) target = $region9
    $region8: #{tpu_custom_call.1} parent=1 // pred_region
      _
    $region9: #{tpu_custom_call.1} parent=1 // pred_fallthru
      _
    // Predicated region
    $region10: #{tpu_custom_call.1} parent=1 // pred_check
      _
    $region11: #{tpu_custom_call.1} parent=1 // pred_check_branch
      %15 = sbr.rel (0) target = $region13
    $region12: #{tpu_custom_call.1} parent=1 // pred_region
      _
    $region13: #{tpu_custom_call.1} parent=1 // pred_fallthru
      _
    // Predicated region
    $region14: #{tpu_custom_call.1} parent=1 // pred_check
      _
    $region15: #{tpu_custom_call.1} parent=1 // pred_check_branch
      %17 = sbr.rel (0) target = $region17
    $region16: #{tpu_custom_call.1} parent=1 // pred_region
      _
    $region17: #{tpu_custom_call.1} parent=1 // pred_fallthru
      _
    %v18 = vld [vmem:[%s0] sm:$0xff]
    %v19 = vld [vmem:[%s1] sm:$0xff]
    %v20 = vld [vmem:[%s1 + $0x8] sm:$0xff]
    %v21 = vld [vmem:[%s1 + $0x10] sm:$0xff]
    %v22 = vld [vmem:[%s1 + $0x18] sm:$0xff]
    %v23 = vld [vmem:[%s1 + $0x20] sm:$0xff]
    %v24 = vld [vmem:[%s1 + $0x28] sm:$0xff]
    %v25 = vld [vmem:[%s1 + $0x30] sm:$0xff]
    %v26 = vld [vmem:[%s1 + $0x38] sm:$0xff]
    %v27 = vld [vmem:[%s1 + $0x40] sm:$0xff]
    %v28 = vld [vmem:[%s1 + $0x48] sm:$0xff]
    %v29 = vld [vmem:[%s1 + $0x50] sm:$0xff]
    %v30 = vld [vmem:[%s1 + $0x58] sm:$0xff]
    %v31 = vld [vmem:[%s1 + $0x60] sm:$0xff]
    %v32 = vld [vmem:[%s1 + $0x68] sm:$0xff]
    %v33 = vld [vmem:[%s1 + $0x70] sm:$0xff]
    %v34 = vld [vmem:[%s1 + $0x78] sm:$0xff]
    %vm35 = vcmask 261120
    %v37 = vsel %vm35, %v18, 0
    %v40 = vsel %vm35, %v19, 0
    %v43 = vsel %vm35, %v20, 0
    %v46 = vsel %vm35, %v21, 0
    %v49 = vsel %vm35, %v22, 0
    %v52 = vsel %vm35, %v23, 0
    %v55 = vsel %vm35, %v24, 0
    %v58 = vsel %vm35, %v25, 0
    %v61 = vsel %vm35, %v26, 0
    %v64 = vsel %vm35, %v27, 0
    %v67 = vsel %vm35, %v28, 0
    %v70 = vsel %vm35, %v29, 0
    %v73 = vsel %vm35, %v30, 0
    %v76 = vsel %vm35, %v31, 0
    %v79 = vsel %vm35, %v32, 0
    %v82 = vsel %vm35, %v33, 0
    %v85 = vsel %vm35, %v34, 0
    %87 = vmatprep.subr.mxu0 0.0
    %88 = vmatpush1.xpose.msra.mxu0 %v40
    %89 = vmatprep.subr.mxu0 0.0
    %90 = vmatpush1.xpose.msra.mxu0 %v43
    %91 = vmatprep.subr.mxu0 0.0
    %92 = vmatpush1.xpose.msra.mxu0 %v46
    %93 = vmatprep.subr.mxu0 0.0
    %94 = vmatpush1.xpose.msra.mxu0 %v49
    %95 = vmatprep.subr.mxu0 0.0
    %96 = vmatpush1.xpose.msra.mxu0 %v52
    %97 = vmatprep.subr.mxu0 0.0
    %98 = vmatpush1.xpose.msra.mxu0 %v55
    %99 = vmatprep.subr.mxu0 0.0
    %100 = vmatpush1.xpose.msra.mxu0 %v58
    %101 = vmatprep.subr.mxu0 0.0
    %102 = vmatpush1.xpose.msra.mxu0 %v61
    %103 = vmatprep.subr.mxu0 0.0
    %104 = vmatpush1.xpose.msra.mxu0 %v64
    %105 = vmatprep.subr.mxu0 0.0
    %106 = vmatpush1.xpose.msra.mxu0 %v67
    %107 = vmatprep.subr.mxu0 0.0
    %108 = vmatpush1.xpose.msra.mxu0 %v70
    %109 = vmatprep.subr.mxu0 0.0
    %110 = vmatpush1.xpose.msra.mxu0 %v73
    %111 = vmatprep.subr.mxu0 0.0
    %112 = vmatpush1.xpose.msra.mxu0 %v76
    %113 = vmatprep.subr.mxu0 0.0
    %114 = vmatpush1.xpose.msra.mxu0 %v79
    %115 = vmatprep.subr.mxu0 0.0
    %116 = vmatpush1.xpose.msra.mxu0 %v82
    %117 = vmatprep.subr.mxu0 0.0
    %118 = vmatpush1.xpose.msra.mxu0 %v85
    %119 = vmatprep.subr.mxu0 0.0
    %120 = vmatpush1.xpose.msra.mxu0 0.0
    %121 = vmatprep.subr.mxu0 0.0
    %122 = vmatpush1.xpose.msra.mxu0 0.0
    %123 = vmatprep.subr.mxu0 0.0
    %124 = vmatpush1.xpose.msra.mxu0 0.0
    %125 = vmatprep.subr.mxu0 0.0
    %126 = vmatpush1.xpose.msra.mxu0 0.0
    %127 = vmatprep.subr.mxu0 0.0
    %128 = vmatpush1.xpose.msra.mxu0 0.0
    %129 = vmatprep.subr.mxu0 0.0
    %130 = vmatpush1.xpose.msra.mxu0 0.0
    %131 = vmatprep.subr.mxu0 0.0
    %132 = vmatpush1.xpose.msra.mxu0 0.0
    %133 = vmatprep.subr.mxu0 0.0
    %134 = vmatpush1.xpose.msra.mxu0 0.0
    %135 = vmatprep.subr.mxu0 0.0
    %136 = vmatpush1.xpose.msra.mxu0 0.0
    %137 = vmatprep.subr.mxu0 0.0
    %138 = vmatpush1.xpose.msra.mxu0 0.0
    %139 = vmatprep.subr.mxu0 0.0
    %140 = vmatpush1.xpose.msra.mxu0 0.0
    %141 = vmatprep.subr.mxu0 0.0
    %142 = vmatpush1.xpose.msra.mxu0 0.0
    %143 = vmatprep.subr.mxu0 0.0
    %144 = vmatpush1.xpose.msra.mxu0 0.0
    %145 = vmatprep.subr.mxu0 0.0
    %146 = vmatpush1.xpose.msra.mxu0 0.0
    %147 = vmatprep.subr.mxu0 0.0
    %148 = vmatpush1.xpose.msra.mxu0 0.0
    %149 = vmatprep.subr.mxu0 0.0
    %150 = vmatpush1.xpose.msra.mxu0 0.0
    %151 = vmatprep.mubr.f32.mxu0 0.0
    %152 = vmatmul.mubr.f32.gmra.mrb[0].mxu0 %v37
    %v153 = vpop.f32.mrb[0].mxu0
    %v154 = vadd.f32 0.0, %v153
    %v155 = vpop.f32.mrb[0].mxu0
    %156 = vdwg.mxu0
    %v157 = vld [vmem:[%s2] sm:$0xff]
    %159 = vset.pattern.permute.xlu0 0
    %160 = vperm.xlu0 %159, %v157
    %v161 = vpop.permute.xlu0 %160
    %v163 = vmul.f32 %v154, %v161
    %v164 = vld [vmem:[%s3] sm:$0x1]
    %v166 = vlaneseq
    %v167 = vshrl.u32 %v166, 7
    %v168 = vsub.s32 0, %v167
    %v169 = vrot.slane %v164, %v168
    %v171 = vmul.f32 %v163, %v169
    %v172 = vadd.f32 %v171, 0.5
    %173 = vst [vmem:[#allocation2] sm:$0xff] %v172
    // Predicated region
    $region18: #{tpu_custom_call.1} parent=1 // pred_check
      _
    $region19: #{tpu_custom_call.1} parent=1 // pred_check_branch
      %175 = sbr.rel (0) target = $region21
    $region20: #{tpu_custom_call.1} parent=1 // pred_region
      %s177 = ssub.s32 128, 128
      %178 = vsyncadd [#allocation3], %s177
      %s180 = sshll.u32 [#allocation2], 4
      %s181 = int_to_ptr.vmem [resolvable:$true] %s180
      %183 = dma.vmem_to_hbm [thread:$0]  %s181, 128, %s4, [#allocation3]
    $region21: #{tpu_custom_call.1} parent=1 // pred_fallthru
      _
    // Predicated region
    $region22: #{tpu_custom_call.1} parent=1 // pred_check
      _
    $region23: #{tpu_custom_call.1} parent=1 // pred_check_branch
      %185 = sbr.rel (0) target = $region25
    $region24: #{tpu_custom_call.1} parent=1 // pred_region
      %186 = dma.done [#allocation3], 128
    $region25: #{tpu_custom_call.1} parent=1 // pred_fallthru
      _
    %187 = vsyncpa [#allocation3], 1

</llo_original>
